<compile_context>
chip_gen: v5e
topology: v5e:2x2
jax: 0.10.0
libtpu: 0.0.40
codegen_flags: <defaults>
</compile_context>

<pallas_src>
import functools

import jax
import jax.numpy as jnp
from jax.experimental import pallas as pl
from jax.experimental.pallas import tpu as pltpu


def _round_up(v, m):
    return ((v + m - 1) // m) * m


def _bf16_eup_available():
    """bf16 transcendental path exists on v6e/v7x; keep f32 tanh elsewhere."""
    try:
        kind = jax.devices()[0].device_kind.lower()
    except Exception:
        return False
    return any(tag in kind for tag in ("v6", "v7", "trillium"))


def _crf_decoder_kernel(x_ref, w_ref, b_ref, blank_ref, o_ref, *, scale, tanh_dtype):
    # x_ref:     (tm, c_in)   row tile of the flattened (T*N, insize) input
    # w_ref:     (c_in, cout) full (pre-interleaved) weight, VMEM-resident
    # b_ref:     (1, cout)    full (pre-interleaved) bias, f32
    # blank_ref: (1, cout)    blank_score at blank slots, 0 elsewhere, f32
    # o_ref:     (tm, cout)
    z = jnp.dot(x_ref[...], w_ref[...], preferred_element_type=jnp.float32)
    z = z + b_ref[...]                       # f32 accumulate + bias
    s = jnp.tanh(z.astype(tanh_dtype))       # bf16 tanh on v6e/v7x, f32 on v5e
    if scale is not None:
        s = s * jnp.asarray(scale, dtype=s.dtype)
    # Exact blank interleave: blank weight/bias columns are zero, so the score
    # there is tanh(0)*scale == 0 and this broadcast add is exact.
    s = s + blank_ref[...].astype(s.dtype)
    o_ref[...] = s.astype(o_ref.dtype)


def _interleave_params(w_t, b, n_base):
    """Pre-interleave weight/bias so output columns are already in blank order
    (ZERO weight/bias at every (n_base+1)-th column -> additive blank is exact)."""
    c_in, size = w_t.shape
    groups = size // n_base
    w5 = jnp.concatenate(
        [jnp.zeros((c_in, groups, 1), w_t.dtype),
         w_t.reshape(c_in, groups, n_base)], axis=-1,
    ).reshape(c_in, groups * (n_base + 1))
    b5 = jnp.concatenate(
        [jnp.zeros((groups, 1), b.dtype), b.reshape(groups, n_base)], axis=-1,
    ).reshape(1, groups * (n_base + 1))
    return w5, b5


def _blank_vector(cout, n_base, blank_score):
    if blank_score is None:
        return jnp.zeros((1, cout), jnp.float32)
    col = jnp.arange(cout, dtype=jnp.int32)
    vec = jnp.where((col % (n_base + 1)) == 0, jnp.float32(blank_score),
                    jnp.float32(0.0))
    return vec.reshape(1, cout).astype(jnp.float32)


def bonito_linear_crf_decoder(x, w_t, b, *, n_base=4, scale=5.0, blank_score=2.0,
                              row_tile=None, out_dtype=jnp.bfloat16,
                              matmul_dtype=jnp.bfloat16, tanh_dtype=None,
                              vmem_limit_bytes=None):
    """x: (T, N, insize); w_t: (insize, size) (= PyTorch weight.T); b: (size,)."""
    T, N, c_in = x.shape
    size = w_t.shape[1]
    M = T * N
    out_dtype = jnp.dtype(out_dtype)
    matmul_dtype = jnp.dtype(matmul_dtype)

    if tanh_dtype is None:
        tanh_dtype = (jnp.bfloat16
                      if (out_dtype == jnp.bfloat16 and _bf16_eup_available())
                      else jnp.float32)
    tanh_dtype = jnp.dtype(tanh_dtype)

    if blank_score is not None:
        w_run, b_run = _interleave_params(w_t, b, n_base)
    else:
        w_run, b_run = w_t, b.reshape(1, size)
    cout = w_run.shape[1]
    blank_run = _blank_vector(cout, n_base, blank_score)

    x2 = x.reshape(M, c_in).astype(matmul_dtype)
    w_run = w_run.astype(matmul_dtype)
    b_run = b_run.astype(jnp.float32)

    # --- row tile selection -------------------------------------------------
    if row_tile is None:
        row_tile = 2048 if out_dtype == jnp.bfloat16 else 1024
    align = 16 if out_dtype == jnp.bfloat16 else 8   # bf16 packs 2 rows/sublane
    if M <= align:
        tm = M                                       # full-array block is legal
    else:
        # Cap the tile so the row grid has >= 2 steps: keeps both v7x
        # TensorCores busy via dimension_semantics=("parallel",).
        tm = min(row_tile, _round_up(pl.cdiv(M, 2), align))
        tm = max(align, (tm // align) * align)
    grid = (pl.cdiv(M, tm),)                         # ragged tail padded by Pallas

    # --- explicit VMEM budget (double-buffered tiles + resident params) -----
    if vmem_limit_bytes is None:
        need = (2 * tm * c_in * matmul_dtype.itemsize      # x tile x2
                + 2 * tm * cout * out_dtype.itemsize       # out tile x2
                + 2 * c_in * cout * matmul_dtype.itemsize  # weight (resident)
                + 4 * cout * 4)                            # bias + blank rows
        vmem_limit_bytes = min(max(int(need * 1.5) + (2 << 20), 8 << 20),
                               64 << 20)                   # safe on v7x's 64 MiB

    out2 = pl.pallas_call(
        functools.partial(_crf_decoder_kernel, scale=scale, tanh_dtype=tanh_dtype),
        out_shape=jax.ShapeDtypeStruct((M, cout), out_dtype),
        grid_spec=pl.GridSpec(
            grid=grid,
            in_specs=[
                pl.BlockSpec((tm, c_in), lambda i: (i, 0)),     # row tile of x
                pl.BlockSpec((c_in, cout), lambda i: (0, 0)),   # whole weight
                pl.BlockSpec((1, cout), lambda i: (0, 0)),      # whole bias
                pl.BlockSpec((1, cout), lambda i: (0, 0)),      # blank vector
            ],
            out_specs=pl.BlockSpec((tm, cout), lambda i: (i, 0)),
        ),
        compiler_params=pltpu.CompilerParams(
            dimension_semantics=("parallel",),
            vmem_limit_bytes=vmem_limit_bytes),
    )(x2, w_run, b_run, blank_run)

    return out2.reshape(T, N, cout)


def _reference(x, w_t, b, *, n_base=4, scale=5.0, blank_score=2.0):
    scores = jnp.tanh(x.astype(jnp.float32) @ w_t.astype(jnp.float32)
                      + b.astype(jnp.float32)) * scale
    if blank_score is None:
        return scores
    T, N, C = scores.shape
    blank = jnp.full((T, N, C // n_base, 1), blank_score, dtype=scores.dtype)
    return jnp.concatenate(
        [blank, scores.reshape(T, N, C // n_base, n_base)], axis=-1
    ).reshape(T, N, -1)


if __name__ == "__main__":
    # Module config (guppy defaults): n_base=4, state_len=4 -> size = 4**5 = 1024
    insize = 32
    n_base = 4
    state_len = 4
    scale = 5.0
    blank_score = 2.0
    size = n_base ** (state_len + 1)            # 1024
    cout = (size // n_base) * (n_base + 1)      # 1280

    key = jax.random.PRNGKey(0)
    kx, kw, kb, kx2 = jax.random.split(key, 4)

    # PyTorch Linear: weight (size, insize), bias (size,).  Build weight.T directly.
    w_t = jax.random.normal(kw, (insize, size), dtype=jnp.float32) * 0.05
    b = jax.random.normal(kb, (size,), dtype=jnp.float32) * 0.05

    # --- Test 1: f32 everywhere, exact match against the reference ----------
    T, N = 8, 2
    x = jax.random.normal(kx, (T, N, insize), dtype=jnp.float32)
    ref = _reference(x, w_t, b, n_base=n_base, scale=scale, blank_score=blank_score)

    out_f32 = bonito_linear_crf_decoder(
        x, w_t, b, n_base=n_base, scale=scale, blank_score=blank_score,
        out_dtype=jnp.float32, matmul_dtype=jnp.float32, tanh_dtype=jnp.float32)
    out_f32 = jax.block_until_ready(out_f32)
    assert out_f32.shape == (T, N, cout), out_f32.shape
    assert jnp.allclose(out_f32, ref, atol=1e-5, rtol=1e-5), "f32 mismatch vs reference"

    # --- Test 2: ragged row tail (M=15 not divisible by the row tile) -------
    T2, N2 = 5, 3
    x_b = jax.random.normal(kx2, (T2, N2, insize), dtype=jnp.float32)
    ref_b = _reference(x_b, w_t, b, n_base=n_base, scale=scale,
                       blank_score=blank_score)
    out_b = bonito_linear_crf_decoder(
        x_b, w_t, b, n_base=n_base, scale=scale, blank_score=blank_score,
        out_dtype=jnp.float32, matmul_dtype=jnp.float32, tanh_dtype=jnp.float32,
        row_tile=8)
    out_b = jax.block_until_ready(out_b)
    assert jnp.allclose(out_b, ref_b, atol=1e-5, rtol=1e-5), "partial-tile mismatch"

    # --- Test 3: production path (bf16 out / bf16 matmul / gated bf16 tanh) -
    out_prod = bonito_linear_crf_decoder(
        x, w_t, b, n_base=n_base, scale=scale, blank_score=blank_score)
    out_prod = jax.block_until_ready(out_prod)
    assert out_prod.dtype == jnp.bfloat16
    assert jnp.allclose(out_prod.astype(jnp.float32), ref, atol=0.08, rtol=0.05), \
        "bf16 production mismatch vs reference"
    # Blank slots must be EXACTLY blank_score (zero weight/bias columns + add).
    blanks = out_prod[..., 0::n_base + 1].astype(jnp.float32)
    assert jnp.all(blanks == jnp.float32(blank_score)), "blank columns not exact"

    print("KERNEL_OK")
</pallas_src>

<mosaic_0001>
module attributes {stable_mosaic.version = 11 : i64} {
  func.func @_crf_decoder_kernel(%arg0: i32, %arg1: memref<8x32xf32, #tpu.memory_space<vmem>>, %arg2: memref<32x1280xf32, #tpu.memory_space<vmem>>, %arg3: memref<1x1280xf32, #tpu.memory_space<vmem>>, %arg4: memref<1x1280xf32, #tpu.memory_space<vmem>>, %arg5: memref<8x1280xf32, #tpu.memory_space<vmem>>) attributes {dimension_semantics = [#tpu.dimension_semantics<parallel>], iteration_bounds = array<i64: 2>, scalar_prefetch = 0 : i64, scratch_operands = 0 : i64, tpu.core_type = #tpu.core_type<tc>, window_params = [{transform_indices = @transform_0, window_bounds = array<i64: 8, 32>}, {pipeline_mode = #tpu.pipeline_mode<synchronous>, transform_indices = @transform_1, window_bounds = array<i64: 32, 1280>}, {pipeline_mode = #tpu.pipeline_mode<synchronous>, transform_indices = @transform_2, window_bounds = array<i64: 1, 1280>}, {pipeline_mode = #tpu.pipeline_mode<synchronous>, transform_indices = @transform_3, window_bounds = array<i64: 1, 1280>}, {transform_indices = @transform_4, window_bounds = array<i64: 8, 1280>}]} {
    %c0 = arith.constant 0 : index
    %c0_0 = arith.constant 0 : index
    %0 = vector.load %arg1[%c0, %c0_0] : memref<8x32xf32, #tpu.memory_space<vmem>>, vector<8x32xf32>
    %c0_1 = arith.constant 0 : index
    %c0_2 = arith.constant 0 : index
    %1 = vector.load %arg2[%c0_1, %c0_2] : memref<32x1280xf32, #tpu.memory_space<vmem>>, vector<32x1280xf32>
    %cst = arith.constant dense<0.000000e+00> : vector<8x1280xf32>
    %2 = tpu.matmul %0, %1, %cst {dimension_numbers = #tpu.dot_dimension_numbers<[1], [0], [0], [1], [0, 0, 1, 1], [], []>} : vector<8x32xf32>, vector<32x1280xf32>, vector<8x1280xf32> -> vector<8x1280xf32>
    %c0_3 = arith.constant 0 : index
    %c0_4 = arith.constant 0 : index
    %3 = vector.load %arg3[%c0_3, %c0_4] : memref<1x1280xf32, #tpu.memory_space<vmem>>, vector<1x1280xf32>
    %4 = vector.broadcast %3 : vector<1x1280xf32> to vector<8x1280xf32>
    %5 = arith.addf %2, %4 : vector<8x1280xf32>
    %6 = math.tanh %5 : vector<8x1280xf32>
    %cst_5 = arith.constant 5.000000e+00 : f32
    %7 = vector.broadcast %cst_5 : f32 to vector<8x1280xf32>
    %8 = arith.mulf %6, %7 : vector<8x1280xf32>
    %c0_6 = arith.constant 0 : index
    %c0_7 = arith.constant 0 : index
    %9 = vector.load %arg4[%c0_6, %c0_7] : memref<1x1280xf32, #tpu.memory_space<vmem>>, vector<1x1280xf32>
    %10 = vector.broadcast %9 : vector<1x1280xf32> to vector<8x1280xf32>
    %11 = arith.addf %8, %10 : vector<8x1280xf32>
    %c0_8 = arith.constant 0 : index
    %c0_9 = arith.constant 0 : index
    %12 = vector.load %arg5[%c0_8, %c0_9] : memref<8x1280xf32, #tpu.memory_space<vmem>>, vector<8x1280xf32>
    tpu.vector_store %arg5[%c0_8, %c0_9], %11 {strides = array<i32>} : memref<8x1280xf32, #tpu.memory_space<vmem>>, vector<8x1280xf32>,
    return
  }
  func.func @transform_0(%arg0: i32) -> (i32, i32) {
    %c0_i32 = arith.constant 0 : i32
    %c0_i32_0 = arith.constant 0 : i32
    return %arg0, %c0_i32 : i32, i32
  }
  func.func @transform_1(%arg0: i32) -> (i32, i32) {
    %c0_i32 = arith.constant 0 : i32
    %c0_i32_0 = arith.constant 0 : i32
    %c0_i32_1 = arith.constant 0 : i32
    return %c0_i32, %c0_i32_0 : i32, i32
  }
  func.func @transform_2(%arg0: i32) -> (i32, i32) {
    %c0_i32 = arith.constant 0 : i32
    %c0_i32_0 = arith.constant 0 : i32
    %c0_i32_1 = arith.constant 0 : i32
    return %c0_i32, %c0_i32_0 : i32, i32
  }
  func.func @transform_3(%arg0: i32) -> (i32, i32) {
    %c0_i32 = arith.constant 0 : i32
    %c0_i32_0 = arith.constant 0 : i32
    %c0_i32_1 = arith.constant 0 : i32
    return %c0_i32, %c0_i32_0 : i32, i32
  }
  func.func @transform_4(%arg0: i32) -> (i32, i32) {
    %c0_i32 = arith.constant 0 : i32
    %c0_i32_0 = arith.constant 0 : i32
    return %arg0, %c0_i32 : i32, i32
  }
}

</mosaic_0001>

<llo_original>
// kernel: tpu_custom_call.1
$region0: #{tpu_custom_call.1}
  #allocation0 [shape = 'u32[]', space=smem, size = 0x4, offset = 0x4, fixed_abs, tag = 'smem constant byte address 0x4 - core index']
  #allocation1 [shape = 'u32[72,128]{1,0:T(1,128)}', space=vmem, size = 0x9000, scoped, tag = 'internal scratch']
  %s0 = inlined_call_operand.hbm [shape: f32[16,32], index: 0, kind: input, shape index: {}]
  %s1 = inlined_call_operand.hbm [shape: f32[32,1280], index: 1, kind: input, shape index: {}]
  %s2 = inlined_call_operand.hbm [shape: f32[1,1280], index: 2, kind: input, shape index: {}]
  %s3 = inlined_call_operand.hbm [shape: f32[1,1280], index: 3, kind: input, shape index: {}]
  %s4 = inlined_call_operand.hbm [shape: f32[16,1280], index: 4, kind: output, shape index: {}]
  %s5 = sld [smem:[#allocation0]]
  $region65: #{tpu_custom_call.1} parent=0
    _
  %s7 = ssub.s32 1, %s5
  %s8 = scalar_select 0, %s7, %s5
  $region1: #{tpu_custom_call.1} parent=0
    #allocation2 [shape = 'u8[8192]{0}', space=vmem, size = 0x2000, scoped, tag = 'input window, operand 0']
    #allocation3 [shape = 's32[2]{0}', space=sflag, size = 0x8, scoped, tag = 'scoped memory for tpu_custom_call.1']
    #allocation4 [shape = 's32[2]{0}', space=sflag, size = 0x8, scoped, tag = 'scoped memory for tpu_custom_call.1']
    #allocation5 [shape = 'u8[163840]{0}', space=vmem, size = 0x28000, scoped, tag = 'input window, operand 1, single buffered']
    #allocation6 [shape = 's32[1]{0}', space=sflag, size = 0x4, scoped, tag = 'scoped memory for tpu_custom_call.1']
    #allocation7 [shape = 'u8[5120]{0}', space=vmem, size = 0x1400, scoped, tag = 'input window, operand 2, single buffered']
    #allocation8 [shape = 'u8[5120]{0}', space=vmem, size = 0x1400, scoped, tag = 'input window, operand 3, single buffered']
    #allocation9 [shape = 's32[1]{0}', space=sflag, size = 0x4, scoped, tag = 'scoped memory for tpu_custom_call.1']
    #allocation10 [shape = 'u8[81920]{0}', space=vmem, size = 0x14000, scoped, tag = 'output window, operand 0']
    %9 = vsyncpa [#allocation3], 0
    %s10 = scalar_lea.sflag [#allocation3], 1
    %11 = vsyncpa %s10, 0
    %12 = vsyncpa [#allocation6], 0
    %13 = vsyncpa [#allocation9], 0
    %14 = vsyncpa [#allocation4], 0
    %s15 = scalar_lea.sflag [#allocation4], 1
    %16 = vsyncpa %s15, 0
    loop: start=0, step=1, limit=4
    $region2: #{tpu_custom_call.1} parent=1 // loop_pre_header
      _
    $region3: #{tpu_custom_call.1} parent=1 // loop_header
      %s18 = sphi 0, %s22
      %p19 = scmp.ge.s32.totalorder %s18, 4
      %s28 = sphi 0, %s30
      %s31 = sphi 0, %s28
      %s32 = sphi 0, %s31
      %s48 = sphi 0, %s32
      %s52 = sphi 0, %s52
      %s54 = sphi 0, %s52
      %s55 = sphi 0, %s54
      %s69 = sphi 0, %s55
      %s73 = sphi 0, %s73
      %s75 = sphi 0, %s73
      %s76 = sphi 0, %s75
      %s90 = sphi 0, %s76
      %s94 = sphi 0, %s94
      %s96 = sphi 0, %s94
      %s97 = sphi 0, %s96
      %s111 = sphi 0, %s97
      %s117 = sphi 0, %s119
      %s120 = sphi 0, %s117
      %s121 = sphi 0, %s120
      %s137 = sphi 0, %s121
    $region4: #{tpu_custom_call.1} parent=1 // loop_header_branch
      %21 = sbr.rel (%p19) target = $region8
    $region5: #{tpu_custom_call.1} parent=1 // loop_body
      %s23 = ssub.s32 %s18, 1
      %s24 = ssub.s32 %s18, 2
      %s25 = sadd.s32 %s18, 1
      %s26 = ssub.s32 %s18, %s25
      %p27 = scmp.eq.s32.totalorder %s26, 0
      %s29 = sadd.s32 %s28, 1
      %s30 = scalar_select %p27, %s28, %s29
      %p33 = pneg %p27
      %p34 = scmp.eq.s32.totalorder %s18, 1
      %p35 = por %p33, %p34
      %p36 = scmp.ne.s32.totalorder %s28, %s31
      %p37 = scmp.eq.s32.totalorder %s18, 0
      %p38 = por %p36, %p37
      %p39 = scmp.ne.s32.totalorder %s28, %s31
      %p40 = scmp.eq.s32.totalorder %s23, 1
      %p41 = por %p39, %p40
      %p42 = scmp.ne.s32.totalorder %s31, %s32
      %p43 = scmp.eq.s32.totalorder %s23, 0
      %p44 = por %p42, %p43
      %p45 = scmp.ne.s32.totalorder %s31, %s32
      %p46 = scmp.eq.s32.totalorder %s24, 1
      %p47 = por %p45, %p46
      %p49 = scmp.ne.s32.totalorder %s32, %s48
      %p50 = scmp.eq.s32.totalorder %s24, 0
      %p51 = por %p49, %p50
      %s53 = sadd.s32 %s52, 1
      %p56 = scmp.eq.s32.totalorder %s18, 1
      %p57 = scmp.ne.s32.totalorder %s52, %s54
      %p58 = scmp.eq.s32.totalorder %s18, 0
      %p59 = por %p57, %p58
      %p60 = scmp.ne.s32.totalorder %s52, %s54
      %p61 = scmp.eq.s32.totalorder %s23, 1
      %p62 = por %p60, %p61
      %p63 = scmp.ne.s32.totalorder %s54, %s55
      %p64 = scmp.eq.s32.totalorder %s23, 0
      %p65 = por %p63, %p64
      %p66 = scmp.ne.s32.totalorder %s54, %s55
      %p67 = scmp.eq.s32.totalorder %s24, 1
      %p68 = por %p66, %p67
      %p70 = scmp.ne.s32.totalorder %s55, %s69
      %p71 = scmp.eq.s32.totalorder %s24, 0
      %p72 = por %p70, %p71
      %s74 = sadd.s32 %s73, 1
      %p77 = scmp.eq.s32.totalorder %s18, 1
      %p78 = scmp.ne.s32.totalorder %s73, %s75
      %p79 = scmp.eq.s32.totalorder %s18, 0
      %p80 = por %p78, %p79
      %p81 = scmp.ne.s32.totalorder %s73, %s75
      %p82 = scmp.eq.s32.totalorder %s23, 1
      %p83 = por %p81, %p82
      %p84 = scmp.ne.s32.totalorder %s75, %s76
      %p85 = scmp.eq.s32.totalorder %s23, 0
      %p86 = por %p84, %p85
      %p87 = scmp.ne.s32.totalorder %s75, %s76
      %p88 = scmp.eq.s32.totalorder %s24, 1
      %p89 = por %p87, %p88
      %p91 = scmp.ne.s32.totalorder %s76, %s90
      %p92 = scmp.eq.s32.totalorder %s24, 0
      %p93 = por %p91, %p92
      %s95 = sadd.s32 %s94, 1
      %p98 = scmp.eq.s32.totalorder %s18, 1
      %p99 = scmp.ne.s32.totalorder %s94, %s96
      %p100 = scmp.eq.s32.totalorder %s18, 0
      %p101 = por %p99, %p100
      %p102 = scmp.ne.s32.totalorder %s94, %s96
      %p103 = scmp.eq.s32.totalorder %s23, 1
      %p104 = por %p102, %p103
      %p105 = scmp.ne.s32.totalorder %s96, %s97
      %p106 = scmp.eq.s32.totalorder %s23, 0
      %p107 = por %p105, %p106
      %p108 = scmp.ne.s32.totalorder %s96, %s97
      %p109 = scmp.eq.s32.totalorder %s24, 1
      %p110 = por %p108, %p109
      %p112 = scmp.ne.s32.totalorder %s97, %s111
      %p113 = scmp.eq.s32.totalorder %s24, 0
      %p114 = por %p112, %p113
      %s115 = ssub.s32 %s18, %s25
      %p116 = scmp.eq.s32.totalorder %s115, 0
      %s118 = sadd.s32 %s117, 1
      %s119 = scalar_select %p116, %s117, %s118
      %p122 = pneg %p116
      %p123 = scmp.eq.s32.totalorder %s18, 1
      %p124 = por %p122, %p123
      %p125 = scmp.ne.s32.totalorder %s117, %s120
      %p126 = scmp.eq.s32.totalorder %s18, 0
      %p127 = por %p125, %p126
      %p128 = scmp.ne.s32.totalorder %s117, %s120
      %p129 = scmp.eq.s32.totalorder %s23, 1
      %p130 = por %p128, %p129
      %p131 = scmp.ne.s32.totalorder %s120, %s121
      %p132 = scmp.eq.s32.totalorder %s23, 0
      %p133 = por %p131, %p132
      %p134 = scmp.ne.s32.totalorder %s120, %s121
      %p135 = scmp.eq.s32.totalorder %s24, 1
      %p136 = por %p134, %p135
      %p138 = scmp.ne.s32.totalorder %s121, %s137
      %p139 = scmp.eq.s32.totalorder %s24, 0
      %p140 = por %p138, %p139
      %p141 = scmp.le.s32.totalorder 1, %s18
      %p142 = scmp.lt.s32.totalorder %s18, 3
      %p143 = pnand %p141, %p142
      %p144 = pneg %p143
      // Predicated region
      $region9: #{tpu_custom_call.1} parent=5 // pred_check
        _
      $region10: #{tpu_custom_call.1} parent=5 // pred_check_branch
        %146 = sbr.rel (%p143) target = $region12
      $region11: #{tpu_custom_call.1} parent=5 // pred_region
        %s147 = ssub.s32 %s18, 1
        // Predicated region
        $region13: #{tpu_custom_call.1} parent=11 // pred_check
          %p148 = pneg %p65
        $region14: #{tpu_custom_call.1} parent=11 // pred_check_branch
          %150 = sbr.rel (%p148) target = $region16
        $region15: #{tpu_custom_call.1} parent=11 // pred_region
          %152 = vsyncadd [#allocation6], 0
          %s153 = sshll.u32 %s1, 4
          %s154 = int_to_ptr.hbm [resolvable:$true] %s153
          %s155 = sshll.u32 [#allocation5], 4
          %s156 = int_to_ptr.vmem [resolvable:$true] %s155
          %161 = dma.hbm_to_vmem [thread:$0]  %s154, 5120, %s156, [#allocation6], 1280, 1280, 80
        $region16: #{tpu_custom_call.1} parent=11 // pred_fallthru
          _
        // Predicated region
        $region17: #{tpu_custom_call.1} parent=11 // pred_check
          %p162 = pneg %p86
        $region18: #{tpu_custom_call.1} parent=11 // pred_check_branch
          %164 = sbr.rel (%p162) target = $region20
        $region19: #{tpu_custom_call.1} parent=11 // pred_region
          %166 = vsyncadd [#allocation6], 0
          %s168 = sshll.u32 %s2, 4
          %s169 = int_to_ptr.hbm [resolvable:$true] %s168
          %s170 = sshll.u32 [#allocation7], 4
          %s171 = int_to_ptr.vmem [resolvable:$true] %s170
          %173 = dma.hbm_to_vmem [thread:$0]  %s169, 160, %s171, [#allocation6]
        $region20: #{tpu_custom_call.1} parent=11 // pred_fallthru
          _
        // Predicated region
        $region21: #{tpu_custom_call.1} parent=11 // pred_check
          %p174 = pneg %p107
        $region22: #{tpu_custom_call.1} parent=11 // pred_check_branch
          %176 = sbr.rel (%p174) target = $region24
        $region23: #{tpu_custom_call.1} parent=11 // pred_region
          %178 = vsyncadd [#allocation9], 0
          %s180 = sshll.u32 %s3, 4
          %s181 = int_to_ptr.hbm [resolvable:$true] %s180
          %s182 = sshll.u32 [#allocation8], 4
          %s183 = int_to_ptr.vmem [resolvable:$true] %s182
          %185 = dma.hbm_to_vmem [thread:$0]  %s181, 160, %s183, [#allocation9]
        $region24: #{tpu_custom_call.1} parent=11 // pred_fallthru
          _
      $region12: #{tpu_custom_call.1} parent=5 // pred_fallthru
        _
      %p186 = scmp.lt.s32.totalorder %s18, 2
      // Predicated region
      $region25: #{tpu_custom_call.1} parent=5 // pred_check
        %p187 = pneg %p186
      $region26: #{tpu_custom_call.1} parent=5 // pred_check_branch
        %189 = sbr.rel (%p187) target = $region28
      $region27: #{tpu_custom_call.1} parent=5 // pred_region
        // Predicated region
        $region29: #{tpu_custom_call.1} parent=27 // pred_check
          %p190 = pneg %p38
        $region30: #{tpu_custom_call.1} parent=27 // pred_check_branch
          %192 = sbr.rel (%p190) target = $region32
        $region31: #{tpu_custom_call.1} parent=27 // pred_region
          %s193 = sand.u32 %s28, 1
          %s194 = scalar_lea.sflag [#allocation3], %s193
          %s195 = sand.u32 %s28, 1
          %s196 = smul.addr %s195, 8
          %s197 = scalar_lea.vmem [#allocation2], %s196
          %199 = vsyncadd %s194, 0
          %s200 = smul.addr %s18, 8
          %s201 = scalar_lea.hbm %s0, %s200
          %s203 = sshll.u32 %s201, 4
          %s204 = int_to_ptr.hbm [resolvable:$true] %s203
          %s205 = sshll.u32 %s197, 4
          %s206 = int_to_ptr.vmem [resolvable:$true] %s205
          %208 = dma.hbm_to_vmem [thread:$0]  %s204, 128, %s206, %s194
        $region32: #{tpu_custom_call.1} parent=27 // pred_fallthru
          _
      $region28: #{tpu_custom_call.1} parent=5 // pred_fallthru
        _
      %p209 = scmp.le.s32.totalorder 1, %s18
      %p210 = scmp.lt.s32.totalorder %s18, 3
      %p211 = pnand %p209, %p210
      %p212 = pneg %p211
      // Predicated region
      $region33: #{tpu_custom_call.1} parent=5 // pred_check
        _
      $region34: #{tpu_custom_call.1} parent=5 // pred_check_branch
        %214 = sbr.rel (%p211) target = $region36
      $region35: #{tpu_custom_call.1} parent=5 // pred_region
        %s215 = ssub.s32 %s18, 1
        %s216 = sand.u32 %s31, 1
        %s217 = scalar_lea.sflag [#allocation3], %s216
        %s218 = sand.u32 %s31, 1
        %s219 = smul.addr %s218, 8
        %s220 = scalar_lea.vmem [#allocation2], %s219
        // Predicated region
        $region37: #{tpu_custom_call.1} parent=35 // pred_check
          %p221 = pneg %p44
        $region38: #{tpu_custom_call.1} parent=35 // pred_check_branch
          %223 = sbr.rel (%p221) target = $region40
        $region39: #{tpu_custom_call.1} parent=35 // pred_region
          %225 = dma.done %s217, 128
        $region40: #{tpu_custom_call.1} parent=35 // pred_fallthru
          _
        // Predicated region
        $region41: #{tpu_custom_call.1} parent=35 // pred_check
          %p226 = pneg %p65
        $region42: #{tpu_custom_call.1} parent=35 // pred_check_branch
          %228 = sbr.rel (%p226) target = $region44
        $region43: #{tpu_custom_call.1} parent=35 // pred_region
          %230 = dma.done [#allocation6], 5120
        $region44: #{tpu_custom_call.1} parent=35 // pred_fallthru
          _
        // Predicated region
        $region45: #{tpu_custom_call.1} parent=35 // pred_check
          %p231 = pneg %p86
        $region46: #{tpu_custom_call.1} parent=35 // pred_check_branch
          %233 = sbr.rel (%p231) target = $region48
        $region47: #{tpu_custom_call.1} parent=35 // pred_region
          %235 = dma.done [#allocation6], 160
        $region48: #{tpu_custom_call.1} parent=35 // pred_fallthru
          _
        // Predicated region
        $region49: #{tpu_custom_call.1} parent=35 // pred_check
          %p236 = pneg %p107
        $region50: #{tpu_custom_call.1} parent=35 // pred_check_branch
          %238 = sbr.rel (%p236) target = $region52
        $region51: #{tpu_custom_call.1} parent=35 // pred_region
          %240 = dma.done [#allocation9], 160
        $region52: #{tpu_custom_call.1} parent=35 // pred_fallthru
          _
        %s241 = sand.u32 %s31, 1
        %s242 = scalar_lea.sflag [#allocation3], %s241
        %s243 = sand.u32 %s31, 1
        %s244 = smul.addr %s243, 8
        %s245 = scalar_lea.vmem [#allocation2], %s244
        %p246 = pneg %p44
        %p247 = pneg %p41
        %p248 = pneg %p65
        %p249 = pneg %p62
        %p250 = pneg %p86
        %p251 = pneg %p83
        %p252 = pneg %p107
        %p253 = pneg %p104
        %p254 = pneg %p133
        %p255 = pneg %p130
        %s256 = sand.u32 %s120, 1
        %s257 = scalar_lea.sflag [#allocation4], %s256
        %s258 = sand.u32 %s120, 1
        %s259 = smul.addr %s258, 80
        %s260 = scalar_lea.vmem [#allocation10], %s259
        %v261 = vld [vmem:[%s220] sm:$0xff]
        %v262 = vld [vmem:[#allocation5] sm:$0xff]
        %v263 = vld [vmem:[#allocation5 + $0x8] sm:$0xff]
        %v264 = vld [vmem:[#allocation5 + $0x10] sm:$0xff]
        %v265 = vld [vmem:[#allocation5 + $0x18] sm:$0xff]
        %v266 = vld [vmem:[#allocation5 + $0x20] sm:$0xff]
        %v267 = vld [vmem:[#allocation5 + $0x28] sm:$0xff]
        %v268 = vld [vmem:[#allocation5 + $0x30] sm:$0xff]
        %v269 = vld [vmem:[#allocation5 + $0x38] sm:$0xff]
        %v270 = vld [vmem:[#allocation5 + $0x40] sm:$0xff]
        %v271 = vld [vmem:[#allocation5 + $0x48] sm:$0xff]
        %v272 = vld [vmem:[#allocation5 + $0x50] sm:$0xff]
        %v273 = vld [vmem:[#allocation5 + $0x58] sm:$0xff]
        %v274 = vld [vmem:[#allocation5 + $0x60] sm:$0xff]
        %v275 = vld [vmem:[#allocation5 + $0x68] sm:$0xff]
        %v276 = vld [vmem:[#allocation5 + $0x70] sm:$0xff]
        %v277 = vld [vmem:[#allocation5 + $0x78] sm:$0xff]
        %v278 = vld [vmem:[#allocation5 + $0x80] sm:$0xff]
        %v279 = vld [vmem:[#allocation5 + $0x88] sm:$0xff]
        %v280 = vld [vmem:[#allocation5 + $0x90] sm:$0xff]
        %v281 = vld [vmem:[#allocation5 + $0x98] sm:$0xff]
        %v282 = vld [vmem:[#allocation5 + $0xa0] sm:$0xff]
        %v283 = vld [vmem:[#allocation5 + $0xa8] sm:$0xff]
        %v284 = vld [vmem:[#allocation5 + $0xb0] sm:$0xff]
        %v285 = vld [vmem:[#allocation5 + $0xb8] sm:$0xff]
        %v286 = vld [vmem:[#allocation5 + $0xc0] sm:$0xff]
        %v287 = vld [vmem:[#allocation5 + $0xc8] sm:$0xff]
        %v288 = vld [vmem:[#allocation5 + $0xd0] sm:$0xff]
        %v289 = vld [vmem:[#allocation5 + $0xd8] sm:$0xff]
        %v290 = vld [vmem:[#allocation5 + $0xe0] sm:$0xff]
        %v291 = vld [vmem:[#allocation5 + $0xe8] sm:$0xff]
        %v292 = vld [vmem:[#allocation5 + $0xf0] sm:$0xff]
        %v293 = vld [vmem:[#allocation5 + $0xf8] sm:$0xff]
        %v294 = vld [vmem:[#allocation5 + $0x100] sm:$0xff]
        %v295 = vld [vmem:[#allocation5 + $0x108] sm:$0xff]
        %v296 = vld [vmem:[#allocation5 + $0x110] sm:$0xff]
        %v297 = vld [vmem:[#allocation5 + $0x118] sm:$0xff]
        %v298 = vld [vmem:[#allocation5 + $0x120] sm:$0xff]
        %v299 = vld [vmem:[#allocation5 + $0x128] sm:$0xff]
        %v300 = vld [vmem:[#allocation5 + $0x130] sm:$0xff]
        %v301 = vld [vmem:[#allocation5 + $0x138] sm:$0xff]
        %v302 = vld [vmem:[#allocation7] sm:$0xff]
        %v303 = vld [vmem:[#allocation7 + $0x8] sm:$0x3]
        %v306 = vperm.slane %v302, 0
        %v307 = vperm.slane %v302, 1
        %v308 = vperm.slane %v302, 2
        %v309 = vperm.slane %v302, 3
        %v310 = vperm.slane %v302, 4
        %v311 = vperm.slane %v302, 5
        %v312 = vperm.slane %v302, 6
        %v313 = vperm.slane %v302, 7
        %v314 = vperm.slane %v303, 0
        %v315 = vperm.slane %v303, 1
        %vm326 = vcmask 261120
        %v328 = vsel %vm326, %v261, 0
        %330 = vmatpush.msra.mxu0 0.0
        %331 = vmatpush.msra.mxu0 0.0
        %332 = vmatpush.msra.mxu0 0.0
        %333 = vmatpush.msra.mxu0 0.0
        %334 = vmatpush.msra.mxu0 0.0
        %335 = vmatpush.msra.mxu0 0.0
        %336 = vmatpush.msra.mxu0 0.0
        %337 = vmatpush.msra.mxu0 0.0
        %338 = vmatpush.msra.mxu0 0.0
        %339 = vmatpush.msra.mxu0 0.0
        %340 = vmatpush.msra.mxu0 0.0
        %341 = vmatpush.msra.mxu0 0.0
        %342 = vmatpush.msra.mxu0 %v292
        %343 = vmatpush.msra.mxu0 %v282
        %344 = vmatpush.msra.mxu0 %v272
        %345 = vmatpush.msra.mxu0 %v262
        %346 = vmatmul.f32.gmra.mxu0 %v328
        %v347 = vpop.f32.mrf.mxu0
        %v348 = vadd.f32 %v306, %v347
        %349 = vdwg.mxu0
        %350 = vmatpush.msra.mxu0 0.0
        %351 = vmatpush.msra.mxu0 0.0
        %352 = vmatpush.msra.mxu0 0.0
        %353 = vmatpush.msra.mxu0 0.0
        %354 = vmatpush.msra.mxu0 0.0
        %355 = vmatpush.msra.mxu0 0.0
        %356 = vmatpush.msra.mxu0 0.0
        %357 = vmatpush.msra.mxu0 0.0
        %358 = vmatpush.msra.mxu0 0.0
        %359 = vmatpush.msra.mxu0 0.0
        %360 = vmatpush.msra.mxu0 0.0
        %361 = vmatpush.msra.mxu0 0.0
        %362 = vmatpush.msra.mxu0 %v293
        %363 = vmatpush.msra.mxu0 %v283
        %364 = vmatpush.msra.mxu0 %v273
        %365 = vmatpush.msra.mxu0 %v263
        %366 = vmatmul.f32.gmra.mxu0 %v328
        %v367 = vpop.f32.mrf.mxu0
        %v368 = vadd.f32 %v307, %v367
        %369 = vdwg.mxu0
        %370 = vmatpush.msra.mxu0 0.0
        %371 = vmatpush.msra.mxu0 0.0
        %372 = vmatpush.msra.mxu0 0.0
        %373 = vmatpush.msra.mxu0 0.0
        %374 = vmatpush.msra.mxu0 0.0
        %375 = vmatpush.msra.mxu0 0.0
        %376 = vmatpush.msra.mxu0 0.0
        %377 = vmatpush.msra.mxu0 0.0
        %378 = vmatpush.msra.mxu0 0.0
        %379 = vmatpush.msra.mxu0 0.0
        %380 = vmatpush.msra.mxu0 0.0
        %381 = vmatpush.msra.mxu0 0.0
        %382 = vmatpush.msra.mxu0 %v294
        %383 = vmatpush.msra.mxu0 %v284
        %384 = vmatpush.msra.mxu0 %v274
        %385 = vmatpush.msra.mxu0 %v264
        %386 = vmatmul.f32.gmra.mxu0 %v328
        %v387 = vpop.f32.mrf.mxu0
        %v388 = vadd.f32 %v308, %v387
        %389 = vdwg.mxu0
        %390 = vmatpush.msra.mxu0 0.0
        %391 = vmatpush.msra.mxu0 0.0
        %392 = vmatpush.msra.mxu0 0.0
        %393 = vmatpush.msra.mxu0 0.0
        %394 = vmatpush.msra.mxu0 0.0
        %395 = vmatpush.msra.mxu0 0.0
        %396 = vmatpush.msra.mxu0 0.0
        %397 = vmatpush.msra.mxu0 0.0
        %398 = vmatpush.msra.mxu0 0.0
        %399 = vmatpush.msra.mxu0 0.0
        %400 = vmatpush.msra.mxu0 0.0
        %401 = vmatpush.msra.mxu0 0.0
        %402 = vmatpush.msra.mxu0 %v295
        %403 = vmatpush.msra.mxu0 %v285
        %404 = vmatpush.msra.mxu0 %v275
        %405 = vmatpush.msra.mxu0 %v265
        %406 = vmatmul.f32.gmra.mxu0 %v328
        %v407 = vpop.f32.mrf.mxu0
        %v408 = vadd.f32 %v309, %v407
        %409 = vdwg.mxu0
        %410 = vmatpush.msra.mxu0 0.0
        %411 = vmatpush.msra.mxu0 0.0
        %412 = vmatpush.msra.mxu0 0.0
        %413 = vmatpush.msra.mxu0 0.0
        %414 = vmatpush.msra.mxu0 0.0
        %415 = vmatpush.msra.mxu0 0.0
        %416 = vmatpush.msra.mxu0 0.0
        %417 = vmatpush.msra.mxu0 0.0
        %418 = vmatpush.msra.mxu0 0.0
        %419 = vmatpush.msra.mxu0 0.0
        %420 = vmatpush.msra.mxu0 0.0
        %421 = vmatpush.msra.mxu0 0.0
        %422 = vmatpush.msra.mxu0 %v296
        %423 = vmatpush.msra.mxu0 %v286
        %424 = vmatpush.msra.mxu0 %v276
        %425 = vmatpush.msra.mxu0 %v266
        %426 = vmatmul.f32.gmra.mxu0 %v328
        %v427 = vpop.f32.mrf.mxu0
        %v428 = vadd.f32 %v310, %v427
        %429 = vdwg.mxu0
        %430 = vmatpush.msra.mxu0 0.0
        %431 = vmatpush.msra.mxu0 0.0
        %432 = vmatpush.msra.mxu0 0.0
        %433 = vmatpush.msra.mxu0 0.0
        %434 = vmatpush.msra.mxu0 0.0
        %435 = vmatpush.msra.mxu0 0.0
        %436 = vmatpush.msra.mxu0 0.0
        %437 = vmatpush.msra.mxu0 0.0
        %438 = vmatpush.msra.mxu0 0.0
        %439 = vmatpush.msra.mxu0 0.0
        %440 = vmatpush.msra.mxu0 0.0
        %441 = vmatpush.msra.mxu0 0.0
        %442 = vmatpush.msra.mxu0 %v297
        %443 = vmatpush.msra.mxu0 %v287
        %444 = vmatpush.msra.mxu0 %v277
        %445 = vmatpush.msra.mxu0 %v267
        %446 = vmatmul.f32.gmra.mxu0 %v328
        %v447 = vpop.f32.mrf.mxu0
        %v448 = vadd.f32 %v311, %v447
        %449 = vdwg.mxu0
        %450 = vmatpush.msra.mxu0 0.0
        %451 = vmatpush.msra.mxu0 0.0
        %452 = vmatpush.msra.mxu0 0.0
        %453 = vmatpush.msra.mxu0 0.0
        %454 = vmatpush.msra.mxu0 0.0
        %455 = vmatpush.msra.mxu0 0.0
        %456 = vmatpush.msra.mxu0 0.0
        %457 = vmatpush.msra.mxu0 0.0
        %458 = vmatpush.msra.mxu0 0.0
        %459 = vmatpush.msra.mxu0 0.0
        %460 = vmatpush.msra.mxu0 0.0
        %461 = vmatpush.msra.mxu0 0.0
        %462 = vmatpush.msra.mxu0 %v298
        %463 = vmatpush.msra.mxu0 %v288
        %464 = vmatpush.msra.mxu0 %v278
        %465 = vmatpush.msra.mxu0 %v268
        %466 = vmatmul.f32.gmra.mxu0 %v328
        %v467 = vpop.f32.mrf.mxu0
        %v468 = vadd.f32 %v312, %v467
        %469 = vdwg.mxu0
        %470 = vmatpush.msra.mxu0 0.0
        %471 = vmatpush.msra.mxu0 0.0
        %472 = vmatpush.msra.mxu0 0.0
        %473 = vmatpush.msra.mxu0 0.0
        %474 = vmatpush.msra.mxu0 0.0
        %475 = vmatpush.msra.mxu0 0.0
        %476 = vmatpush.msra.mxu0 0.0
        %477 = vmatpush.msra.mxu0 0.0
        %478 = vmatpush.msra.mxu0 0.0
        %479 = vmatpush.msra.mxu0 0.0
        %480 = vmatpush.msra.mxu0 0.0
        %481 = vmatpush.msra.mxu0 0.0
        %482 = vmatpush.msra.mxu0 %v299
        %483 = vmatpush.msra.mxu0 %v289
        %484 = vmatpush.msra.mxu0 %v279
        %485 = vmatpush.msra.mxu0 %v269
        %486 = vmatmul.f32.gmra.mxu0 %v328
        %v487 = vpop.f32.mrf.mxu0
        %v488 = vadd.f32 %v313, %v487
        %489 = vdwg.mxu0
        %490 = vmatpush.msra.mxu0 0.0
        %491 = vmatpush.msra.mxu0 0.0
        %492 = vmatpush.msra.mxu0 0.0
        %493 = vmatpush.msra.mxu0 0.0
        %494 = vmatpush.msra.mxu0 0.0
        %495 = vmatpush.msra.mxu0 0.0
        %496 = vmatpush.msra.mxu0 0.0
        %497 = vmatpush.msra.mxu0 0.0
        %498 = vmatpush.msra.mxu0 0.0
        %499 = vmatpush.msra.mxu0 0.0
        %500 = vmatpush.msra.mxu0 0.0
        %501 = vmatpush.msra.mxu0 0.0
        %502 = vmatpush.msra.mxu0 %v300
        %503 = vmatpush.msra.mxu0 %v290
        %504 = vmatpush.msra.mxu0 %v280
        %505 = vmatpush.msra.mxu0 %v270
        %506 = vmatmul.f32.gmra.mxu0 %v328
        %v507 = vpop.f32.mrf.mxu0
        %v508 = vadd.f32 %v314, %v507
        %509 = vdwg.mxu0
        %510 = vmatpush.msra.mxu0 0.0
        %511 = vmatpush.msra.mxu0 0.0
        %512 = vmatpush.msra.mxu0 0.0
        %513 = vmatpush.msra.mxu0 0.0
        %514 = vmatpush.msra.mxu0 0.0
        %515 = vmatpush.msra.mxu0 0.0
        %516 = vmatpush.msra.mxu0 0.0
        %517 = vmatpush.msra.mxu0 0.0
        %518 = vmatpush.msra.mxu0 0.0
        %519 = vmatpush.msra.mxu0 0.0
        %520 = vmatpush.msra.mxu0 0.0
        %521 = vmatpush.msra.mxu0 0.0
        %522 = vmatpush.msra.mxu0 %v301
        %523 = vmatpush.msra.mxu0 %v291
        %524 = vmatpush.msra.mxu0 %v281
        %525 = vmatpush.msra.mxu0 %v271
        %526 = vmatmul.f32.gmra.mxu0 %v328
        %v527 = vpop.f32.mrf.mxu0
        %v528 = vadd.f32 %v315, %v527
        %529 = vdwg.mxu0
        %v530 = vtanh.pop %v348
        %v531 = vtanh.pop %v368
        %v532 = vtanh.pop %v388
        %v533 = vtanh.pop %v408
        %v534 = vtanh.pop %v428
        %v535 = vtanh.pop %v448
        %v536 = vtanh.pop %v468
        %v537 = vtanh.pop %v488
        %v538 = vtanh.pop %v508
        %v539 = vtanh.pop %v528
        %v540 = vmul.f32 %v530, 5.0
        %v541 = vmul.f32 %v531, 5.0
        %v542 = vmul.f32 %v532, 5.0
        %v543 = vmul.f32 %v533, 5.0
        %v544 = vmul.f32 %v534, 5.0
        %v545 = vmul.f32 %v535, 5.0
        %v546 = vmul.f32 %v536, 5.0
        %v547 = vmul.f32 %v537, 5.0
        %v548 = vmul.f32 %v538, 5.0
        %v549 = vmul.f32 %v539, 5.0
        %v550 = vld [vmem:[#allocation8] sm:$0xff]
        %v551 = vld [vmem:[#allocation8 + $0x8] sm:$0x3]
        %v554 = vperm.slane %v550, 0
        %v555 = vperm.slane %v550, 1
        %v556 = vperm.slane %v550, 2
        %v557 = vperm.slane %v550, 3
        %v558 = vperm.slane %v550, 4
        %v559 = vperm.slane %v550, 5
        %v560 = vperm.slane %v550, 6
        %v561 = vperm.slane %v550, 7
        %v562 = vperm.slane %v551, 0
        %v563 = vperm.slane %v551, 1
        %v574 = vadd.f32 %v540, %v554
        %v575 = vadd.f32 %v541, %v555
        %v576 = vadd.f32 %v542, %v556
        %v577 = vadd.f32 %v543, %v557
        %v578 = vadd.f32 %v544, %v558
        %v579 = vadd.f32 %v545, %v559
        %v580 = vadd.f32 %v546, %v560
        %v581 = vadd.f32 %v547, %v561
        %v582 = vadd.f32 %v548, %v562
        %v583 = vadd.f32 %v549, %v563
        %584 = vst [vmem:[%s260] sm:$0xff] %v574
        %585 = vst [vmem:[%s260 + $0x8] sm:$0xff] %v575
        %586 = vst [vmem:[%s260 + $0x10] sm:$0xff] %v576
        %587 = vst [vmem:[%s260 + $0x18] sm:$0xff] %v577
        %588 = vst [vmem:[%s260 + $0x20] sm:$0xff] %v578
        %589 = vst [vmem:[%s260 + $0x28] sm:$0xff] %v579
        %590 = vst [vmem:[%s260 + $0x30] sm:$0xff] %v580
        %591 = vst [vmem:[%s260 + $0x38] sm:$0xff] %v581
        %592 = vst [vmem:[%s260 + $0x40] sm:$0xff] %v582
        %593 = vst [vmem:[%s260 + $0x48] sm:$0xff] %v583
        %s594 = sand.u32 %s120, 1
        %s595 = scalar_lea.sflag [#allocation4], %s594
        %s596 = sand.u32 %s120, 1
        %s597 = smul.addr %s596, 80
        %s598 = scalar_lea.vmem [#allocation10], %s597
        // Predicated region
        $region53: #{tpu_custom_call.1} parent=35 // pred_check
          %p599 = pneg %p130
        $region54: #{tpu_custom_call.1} parent=35 // pred_check_branch
          %601 = sbr.rel (%p599) target = $region56
        $region55: #{tpu_custom_call.1} parent=35 // pred_region
          %603 = vsyncadd %s595, 0
          %s604 = smul.addr %s23, 10
          %s605 = smul.addr %s604, 8
          %s606 = scalar_lea.hbm %s4, %s605
          %s608 = sshll.u32 %s598, 4
          %s609 = int_to_ptr.vmem [resolvable:$true] %s608
          %s610 = sshll.u32 %s606, 4
          %s611 = int_to_ptr.hbm [resolvable:$true] %s610
          %613 = dma.vmem_to_hbm [thread:$0]  %s609, 1280, %s611, %s595
        $region56: #{tpu_custom_call.1} parent=35 // pred_fallthru
          _
      $region36: #{tpu_custom_call.1} parent=5 // pred_fallthru
        _
      %p614 = scmp.le.s32.totalorder 2, %s18
      // Predicated region
      $region57: #{tpu_custom_call.1} parent=5 // pred_check
        %p615 = pneg %p614
      $region58: #{tpu_custom_call.1} parent=5 // pred_check_branch
        %617 = sbr.rel (%p615) target = $region60
      $region59: #{tpu_custom_call.1} parent=5 // pred_region
        %s618 = ssub.s32 %s18, 2
        // Predicated region
        $region61: #{tpu_custom_call.1} parent=59 // pred_check
          %p619 = pneg %p136
        $region62: #{tpu_custom_call.1} parent=59 // pred_check_branch
          %621 = sbr.rel (%p619) target = $region64
        $region63: #{tpu_custom_call.1} parent=59 // pred_region
          %s622 = sand.u32 %s121, 1
          %s623 = scalar_lea.sflag [#allocation4], %s622
          %s624 = sand.u32 %s121, 1
          %s625 = smul.addr %s624, 80
          %s626 = scalar_lea.vmem [#allocation10], %s625
          %628 = dma.done %s623, 1280
        $region64: #{tpu_custom_call.1} parent=59 // pred_fallthru
          _
      $region60: #{tpu_custom_call.1} parent=5 // pred_fallthru
        _
    $region6: #{tpu_custom_call.1} parent=1 // loop_footer
      %s22 = sadd.s32 1, %s18
    $region7: #{tpu_custom_call.1} parent=1 // loop_footer_branch
      %17 = sbr.rel target = $region3
    $region8: #{tpu_custom_call.1} parent=1 // loop_exit
      _
    %629 = vsyncpa [#allocation3], 1
    %s630 = scalar_lea.sflag [#allocation3], 1
    %631 = vsyncpa %s630, 1
    %632 = vsyncpa [#allocation6], 1
    %633 = vsyncpa [#allocation9], 1
    %634 = vsyncpa [#allocation4], 1
    %s635 = scalar_lea.sflag [#allocation4], 1
    %636 = vsyncpa %s635, 1

</llo_original>
